<compile_context>
chip_gen: v6e
topology: v6e:2x2x1
jax: 0.10.0
libtpu: 0.0.40
codegen_flags: <defaults>
</compile_context>

<pallas_src>
import jax
import jax.numpy as jnp
from jax.experimental import pallas as pl
from jax.experimental.pallas import tpu as pltpu


def _grad_sq_sum_kernel(out_ref, tgt_ref, part_ref):
    # Blocks are (TB, H, W) in the input's native dtype; cast to f32 in VMEM.
    e = out_ref[...].astype(jnp.float32) - tgt_ref[...].astype(jnp.float32)

    # Forward differences of the (already-differenced) error image.
    # (dx_o - dx_t) == dx_(o - t) by linearity, same for dy.
    dx = e[:, 1:, :-1] - e[:, :-1, :-1]
    dy = e[:, :-1, 1:] - e[:, :-1, :-1]
    sq = dx * dx + dy * dy                      # (TB, H-1, W-1)

    # Reduce the leading (batch-of-planes) axis first: pure element-wise VPU
    # adds across vregs, no XLU.  Only one cross-lane reduce per grid step.
    plane = jnp.sum(sq, axis=0)                 # (H-1, W-1)
    partial = jnp.sum(plane)                    # scalar partial for this block

    # Lane-dense per-block partial output (one vreg per grid step); the
    # wrapper reads [:, 0, 0].
    part_ref[...] = jnp.broadcast_to(partial, part_ref.shape)


def gradient_loss(output, target, *, target_block_bytes=2 << 20):
    """Pallas implementation of GradientLoss.forward (returns scalar f32)."""
    assert output.shape == target.shape
    N, C, H, W = output.shape
    nc = N * C

    # Keep native dtype in HBM; cast happens inside the kernel.
    out2 = output.reshape(nc, H, W)
    tgt2 = target.reshape(nc, H, W)

    # Batch TB planes per grid step, sized so each pipelined input buffer is
    # ~target_block_bytes (2 inputs x 2 buffers stays well inside scoped VMEM
    # on v5e/v6e/v7x).
    elem_bytes = jnp.dtype(output.dtype).itemsize
    plane_bytes = H * W * elem_bytes
    tb = int(max(1, min(nc, target_block_bytes // plane_bytes)))
    g = pl.cdiv(nc, tb)

    # Zero-pad the plane axis to a multiple of TB; zero planes contribute
    # exactly 0 to the squared-gradient sum, so the result is unchanged.
    padded = g * tb
    if padded != nc:
        pad = padded - nc
        out2 = jnp.pad(out2, ((0, pad), (0, 0), (0, 0)))
        tgt2 = jnp.pad(tgt2, ((0, pad), (0, 0), (0, 0)))

    count = float(nc * (H - 1) * (W - 1))  # denominator of both MSE means

    partials = pl.pallas_call(
        _grad_sq_sum_kernel,
        out_shape=jax.ShapeDtypeStruct((g, 8, 128), jnp.float32),
        grid_spec=pltpu.PrefetchScalarGridSpec(
            num_scalar_prefetch=0,
            grid=(g,),
            in_specs=[
                pl.BlockSpec((tb, H, W), lambda i: (i, 0, 0)),
                pl.BlockSpec((tb, H, W), lambda i: (i, 0, 0)),
            ],
            out_specs=pl.BlockSpec((1, 8, 128), lambda i: (i, 0, 0)),
        ),
        compiler_params=pltpu.CompilerParams(
            # Per-block partial outputs -> no carried state, so the plane axis
            # is truly data-parallel (lets v7x shard it across both TCs).
            dimension_semantics=("parallel",),
            vmem_limit_bytes=32 << 20,
        ),
    )(out2, tgt2)

    # Final tiny reduction + normalization on the host side of the kernel.
    return jnp.sum(partials[:, 0, 0]) * (1.0 / count)


def gradient_loss_ref(output, target):
    """Pure-JAX reference mirroring the PyTorch module."""
    def grads(src):
        d_x = src[:, :, 1:, :-1] - src[:, :, :-1, :-1]
        d_y = src[:, :, :-1, 1:] - src[:, :, :-1, :-1]
        return d_x, d_y

    dxo, dyo = grads(output)
    dxt, dyt = grads(target)
    return jnp.mean((dxo - dxt) ** 2) + jnp.mean((dyo - dyt) ** 2)


if __name__ == "__main__":
    key = jax.random.PRNGKey(0)
    k1, k2 = jax.random.split(key)
    N, C, H, W = 2, 4, 16, 16
    output = jax.random.normal(k1, (N, C, H, W), dtype=jnp.float32)
    target = jax.random.normal(k2, (N, C, H, W), dtype=jnp.float32)

    loss = jax.block_until_ready(gradient_loss(output, target))
    ref = jax.block_until_ready(gradient_loss_ref(output, target))

    assert jnp.allclose(loss, ref, rtol=1e-5, atol=1e-6), (loss, ref)
    print("KERNEL_OK")
</pallas_src>

<mosaic_0001>
module attributes {stable_mosaic.version = 11 : i64} {
  func.func @_grad_sq_sum_kernel(%arg0: i32, %arg1: memref<8x16x16xf32, #tpu.memory_space<vmem>>, %arg2: memref<8x16x16xf32, #tpu.memory_space<vmem>>, %arg3: memref<1x8x128xf32, #tpu.memory_space<vmem>>) attributes {dimension_semantics = [#tpu.dimension_semantics<parallel>], iteration_bounds = array<i64: 1>, scalar_prefetch = 0 : i64, scratch_operands = 0 : i64, tpu.core_type = #tpu.core_type<tc>, window_params = [{transform_indices = @transform_0, window_bounds = array<i64: 8, 16, 16>}, {transform_indices = @transform_1, window_bounds = array<i64: 8, 16, 16>}, {transform_indices = @transform_2, window_bounds = array<i64: 1, 8, 128>}]} {
    %c0 = arith.constant 0 : index
    %c0_0 = arith.constant 0 : index
    %c0_1 = arith.constant 0 : index
    %0 = vector.load %arg1[%c0, %c0_0, %c0_1] : memref<8x16x16xf32, #tpu.memory_space<vmem>>, vector<8x16x16xf32>
    %c0_2 = arith.constant 0 : index
    %c0_3 = arith.constant 0 : index
    %c0_4 = arith.constant 0 : index
    %1 = vector.load %arg2[%c0_2, %c0_3, %c0_4] : memref<8x16x16xf32, #tpu.memory_space<vmem>>, vector<8x16x16xf32>
    %2 = arith.subf %0, %1 : vector<8x16x16xf32>
    %3 = vector.extract_strided_slice %2 {offsets = [0, 1, 0], sizes = [8, 15, 15], strides = [1, 1, 1]} : vector<8x16x16xf32> to vector<8x15x15xf32>
    %4 = vector.extract_strided_slice %2 {offsets = [0, 0, 0], sizes = [8, 15, 15], strides = [1, 1, 1]} : vector<8x16x16xf32> to vector<8x15x15xf32>
    %5 = arith.subf %3, %4 : vector<8x15x15xf32>
    %6 = vector.extract_strided_slice %2 {offsets = [0, 0, 1], sizes = [8, 15, 15], strides = [1, 1, 1]} : vector<8x16x16xf32> to vector<8x15x15xf32>
    %7 = vector.extract_strided_slice %2 {offsets = [0, 0, 0], sizes = [8, 15, 15], strides = [1, 1, 1]} : vector<8x16x16xf32> to vector<8x15x15xf32>
    %8 = arith.subf %6, %7 : vector<8x15x15xf32>
    %9 = arith.mulf %5, %5 : vector<8x15x15xf32>
    %10 = arith.mulf %8, %8 : vector<8x15x15xf32>
    %11 = arith.addf %9, %10 : vector<8x15x15xf32>
    %cst = arith.constant dense<0.000000e+00> : vector<15x15xf32>
    %12 = vector.multi_reduction <add>, %11, %cst [0] : vector<8x15x15xf32> to vector<15x15xf32>
    %13 = vector.shape_cast %12 : vector<15x15xf32> to vector<1x15x15xf32>
    %cst_5 = arith.constant dense<0.000000e+00> : vector<1xf32>
    %14 = vector.multi_reduction <add>, %13, %cst_5 [1, 2] : vector<1x15x15xf32> to vector<1xf32>
    %15 = vector.shape_cast %14 : vector<1xf32> to vector<1x1x1xf32>
    %16 = vector.extract %15[0, 0, 0] : f32 from vector<1x1x1xf32>
    %17 = vector.broadcast %16 : f32 to vector<1x8x128xf32>
    %c0_6 = arith.constant 0 : index
    %c0_7 = arith.constant 0 : index
    %c0_8 = arith.constant 0 : index
    %18 = vector.load %arg3[%c0_6, %c0_7, %c0_8] : memref<1x8x128xf32, #tpu.memory_space<vmem>>, vector<1x8x128xf32>
    tpu.vector_store %arg3[%c0_6, %c0_7, %c0_8], %17 {strides = array<i32>} : memref<1x8x128xf32, #tpu.memory_space<vmem>>, vector<1x8x128xf32>,
    return
  }
  func.func @transform_0(%arg0: i32) -> (i32, i32, i32) {
    %c0_i32 = arith.constant 0 : i32
    %c0_i32_0 = arith.constant 0 : i32
    %c0_i32_1 = arith.constant 0 : i32
    return %arg0, %c0_i32, %c0_i32_0 : i32, i32, i32
  }
  func.func @transform_1(%arg0: i32) -> (i32, i32, i32) {
    %c0_i32 = arith.constant 0 : i32
    %c0_i32_0 = arith.constant 0 : i32
    %c0_i32_1 = arith.constant 0 : i32
    return %arg0, %c0_i32, %c0_i32_0 : i32, i32, i32
  }
  func.func @transform_2(%arg0: i32) -> (i32, i32, i32) {
    %c0_i32 = arith.constant 0 : i32
    %c0_i32_0 = arith.constant 0 : i32
    %c0_i32_1 = arith.constant 0 : i32
    return %arg0, %c0_i32, %c0_i32_0 : i32, i32, i32
  }
}

</mosaic_0001>

<llo_original>
// kernel: tpu_custom_call.1
$region0: #{tpu_custom_call.1}
  #allocation0 [shape = 'u32[]', space=smem, size = 0x4, offset = 0x4, fixed_abs, tag = 'smem constant byte address 0x4 - core index']
  #allocation1 [shape = 'u32[144,128]{1,0:T(1,128)}', space=vmem, size = 0x12000, scoped, tag = 'internal scratch']
  %s0 = inlined_call_operand.hbm [shape: f32[8,16,16], index: 0, kind: input, shape index: {}]
  %s1 = inlined_call_operand.hbm [shape: f32[8,16,16], index: 1, kind: input, shape index: {}]
  %s2 = inlined_call_operand.hbm [shape: f32[1,8,128], index: 2, kind: output, shape index: {}]
  %s3 = sld [smem:[#allocation0]]
  $region26: #{tpu_custom_call.1} parent=0
    _
  %s5 = ssub.s32 1, %s3
  %s6 = scalar_select 0, %s5, %s3
  $region1: #{tpu_custom_call.1} parent=0
    #allocation2 [shape = 'u8[65536]{0}', space=vmem, size = 0x10000, scoped, tag = 'input window, operand 0, single buffered']
    #allocation3 [shape = 's32[1]{0}', space=sflag, size = 0x4, scoped, tag = 'scoped memory for tpu_custom_call.1']
    #allocation4 [shape = 's32[1]{0}', space=sflag, size = 0x4, scoped, tag = 'scoped memory for tpu_custom_call.1']
    #allocation5 [shape = 'u8[65536]{0}', space=vmem, size = 0x10000, scoped, tag = 'input window, operand 1, single buffered']
    #allocation6 [shape = 's32[1]{0}', space=sflag, size = 0x4, scoped, tag = 'scoped memory for tpu_custom_call.1']
    #allocation7 [shape = 'u8[4096]{0}', space=vmem, size = 0x1000, scoped, tag = 'output window, operand 0, single buffered']
    %7 = vsyncpa [#allocation3], 0
    %8 = vsyncpa [#allocation6], 0
    %9 = vsyncpa [#allocation4], 0
    // Predicated region
    $region2: #{tpu_custom_call.1} parent=1 // pred_check
      _
    $region3: #{tpu_custom_call.1} parent=1 // pred_check_branch
      %11 = sbr.rel (0) target = $region5
    $region4: #{tpu_custom_call.1} parent=1 // pred_region
      %s13 = ssub.s32 2048, 2048
      %14 = vsyncadd [#allocation3], %s13
      %s15 = sshll.u32 [#allocation2], 4
      %s16 = int_to_ptr.vmem [resolvable:$true] %s15
      %21 = dma.hbm_to_vmem [thread:$0]  %s0, 2048, %s16, [#allocation3], 128, 128, 8
    $region5: #{tpu_custom_call.1} parent=1 // pred_fallthru
      _
    // Predicated region
    $region6: #{tpu_custom_call.1} parent=1 // pred_check
      _
    $region7: #{tpu_custom_call.1} parent=1 // pred_check_branch
      %23 = sbr.rel (0) target = $region9
    $region8: #{tpu_custom_call.1} parent=1 // pred_region
      %s25 = ssub.s32 2048, 2048
      %26 = vsyncadd [#allocation6], %s25
      %s27 = sshll.u32 [#allocation5], 4
      %s28 = int_to_ptr.vmem [resolvable:$true] %s27
      %33 = dma.hbm_to_vmem [thread:$0]  %s1, 2048, %s28, [#allocation6], 128, 128, 8
    $region9: #{tpu_custom_call.1} parent=1 // pred_fallthru
      _
    // Predicated region
    $region10: #{tpu_custom_call.1} parent=1 // pred_check
      _
    $region11: #{tpu_custom_call.1} parent=1 // pred_check_branch
      %35 = sbr.rel (0) target = $region13
    $region12: #{tpu_custom_call.1} parent=1 // pred_region
      %36 = dma.done [#allocation3], 2048
    $region13: #{tpu_custom_call.1} parent=1 // pred_fallthru
      _
    // Predicated region
    $region14: #{tpu_custom_call.1} parent=1 // pred_check
      _
    $region15: #{tpu_custom_call.1} parent=1 // pred_check_branch
      %38 = sbr.rel (0) target = $region17
    $region16: #{tpu_custom_call.1} parent=1 // pred_region
      %39 = dma.done [#allocation6], 2048
    $region17: #{tpu_custom_call.1} parent=1 // pred_fallthru
      _
    %v40 = vld [vmem:[#allocation2] sm:$0xff]
    %v41 = vld [vmem:[#allocation2 + $0x8] sm:$0xff]
    %v42 = vld [vmem:[#allocation2 + $0x10] sm:$0xff]
    %v43 = vld [vmem:[#allocation2 + $0x18] sm:$0xff]
    %v44 = vld [vmem:[#allocation2 + $0x20] sm:$0xff]
    %v45 = vld [vmem:[#allocation2 + $0x28] sm:$0xff]
    %v46 = vld [vmem:[#allocation2 + $0x30] sm:$0xff]
    %v47 = vld [vmem:[#allocation2 + $0x38] sm:$0xff]
    %v48 = vld [vmem:[#allocation2 + $0x40] sm:$0xff]
    %v49 = vld [vmem:[#allocation2 + $0x48] sm:$0xff]
    %v50 = vld [vmem:[#allocation2 + $0x50] sm:$0xff]
    %v51 = vld [vmem:[#allocation2 + $0x58] sm:$0xff]
    %v52 = vld [vmem:[#allocation2 + $0x60] sm:$0xff]
    %v53 = vld [vmem:[#allocation2 + $0x68] sm:$0xff]
    %v54 = vld [vmem:[#allocation2 + $0x70] sm:$0xff]
    %v55 = vld [vmem:[#allocation2 + $0x78] sm:$0xff]
    %v56 = vld [vmem:[#allocation5] sm:$0xff]
    %v57 = vld [vmem:[#allocation5 + $0x8] sm:$0xff]
    %v58 = vld [vmem:[#allocation5 + $0x10] sm:$0xff]
    %v59 = vld [vmem:[#allocation5 + $0x18] sm:$0xff]
    %v60 = vld [vmem:[#allocation5 + $0x20] sm:$0xff]
    %v61 = vld [vmem:[#allocation5 + $0x28] sm:$0xff]
    %v62 = vld [vmem:[#allocation5 + $0x30] sm:$0xff]
    %v63 = vld [vmem:[#allocation5 + $0x38] sm:$0xff]
    %v64 = vld [vmem:[#allocation5 + $0x40] sm:$0xff]
    %v65 = vld [vmem:[#allocation5 + $0x48] sm:$0xff]
    %v66 = vld [vmem:[#allocation5 + $0x50] sm:$0xff]
    %v67 = vld [vmem:[#allocation5 + $0x58] sm:$0xff]
    %v68 = vld [vmem:[#allocation5 + $0x60] sm:$0xff]
    %v69 = vld [vmem:[#allocation5 + $0x68] sm:$0xff]
    %v70 = vld [vmem:[#allocation5 + $0x70] sm:$0xff]
    %v71 = vld [vmem:[#allocation5 + $0x78] sm:$0xff]
    %v72 = vsub.f32 %v40, %v56
    %v73 = vsub.f32 %v41, %v57
    %v74 = vsub.f32 %v42, %v58
    %v75 = vsub.f32 %v43, %v59
    %v76 = vsub.f32 %v44, %v60
    %v77 = vsub.f32 %v45, %v61
    %v78 = vsub.f32 %v46, %v62
    %v79 = vsub.f32 %v47, %v63
    %v80 = vsub.f32 %v48, %v64
    %v81 = vsub.f32 %v49, %v65
    %v82 = vsub.f32 %v50, %v66
    %v83 = vsub.f32 %v51, %v67
    %v84 = vsub.f32 %v52, %v68
    %v85 = vsub.f32 %v53, %v69
    %v86 = vsub.f32 %v54, %v70
    %v87 = vsub.f32 %v55, %v71
    %vm104 = vcmask 1040384
    %v105 = vrot.slane %v72, 7
    %v106 = vrot.slane %v73, 7
    %v107 = vsel %vm104, %v105, %v106
    %v108 = vrot.slane %v74, 7
    %v109 = vrot.slane %v75, 7
    %v110 = vsel %vm104, %v108, %v109
    %v111 = vrot.slane %v76, 7
    %v112 = vrot.slane %v77, 7
    %v113 = vsel %vm104, %v111, %v112
    %v114 = vrot.slane %v78, 7
    %v115 = vrot.slane %v79, 7
    %v116 = vsel %vm104, %v114, %v115
    %v117 = vrot.slane %v80, 7
    %v118 = vrot.slane %v81, 7
    %v119 = vsel %vm104, %v117, %v118
    %v120 = vrot.slane %v82, 7
    %v121 = vrot.slane %v83, 7
    %v122 = vsel %vm104, %v120, %v121
    %v123 = vrot.slane %v84, 7
    %v124 = vrot.slane %v85, 7
    %v125 = vsel %vm104, %v123, %v124
    %v126 = vrot.slane %v86, 7
    %v127 = vrot.slane %v87, 7
    %v128 = vsel %vm104, %v126, %v127
    %v145 = vsub.f32 %v72, %v105
    %v146 = vsub.f32 %v73, %v107
    %v147 = vsub.f32 %v74, %v108
    %v148 = vsub.f32 %v75, %v110
    %v149 = vsub.f32 %v76, %v111
    %v150 = vsub.f32 %v77, %v113
    %v151 = vsub.f32 %v78, %v114
    %v152 = vsub.f32 %v79, %v116
    %v153 = vsub.f32 %v80, %v117
    %v154 = vsub.f32 %v81, %v119
    %v155 = vsub.f32 %v82, %v120
    %v156 = vsub.f32 %v83, %v122
    %v157 = vsub.f32 %v84, %v123
    %v158 = vsub.f32 %v85, %v125
    %v159 = vsub.f32 %v86, %v126
    %v160 = vsub.f32 %v87, %v128
    %161 = vrot.lane.b32.xlu0 %v72, 1
    %v162 = vpop.permute.xlu0 %161
    %163 = vrot.lane.b32.xlu0 %v73, 1
    %v164 = vpop.permute.xlu0 %163
    %165 = vrot.lane.b32.xlu0 %v74, 1
    %v166 = vpop.permute.xlu0 %165
    %167 = vrot.lane.b32.xlu0 %v75, 1
    %v168 = vpop.permute.xlu0 %167
    %169 = vrot.lane.b32.xlu0 %v76, 1
    %v170 = vpop.permute.xlu0 %169
    %171 = vrot.lane.b32.xlu0 %v77, 1
    %v172 = vpop.permute.xlu0 %171
    %173 = vrot.lane.b32.xlu0 %v78, 1
    %v174 = vpop.permute.xlu0 %173
    %175 = vrot.lane.b32.xlu0 %v79, 1
    %v176 = vpop.permute.xlu0 %175
    %177 = vrot.lane.b32.xlu0 %v80, 1
    %v178 = vpop.permute.xlu0 %177
    %179 = vrot.lane.b32.xlu0 %v81, 1
    %v180 = vpop.permute.xlu0 %179
    %181 = vrot.lane.b32.xlu0 %v82, 1
    %v182 = vpop.permute.xlu0 %181
    %183 = vrot.lane.b32.xlu0 %v83, 1
    %v184 = vpop.permute.xlu0 %183
    %185 = vrot.lane.b32.xlu0 %v84, 1
    %v186 = vpop.permute.xlu0 %185
    %187 = vrot.lane.b32.xlu0 %v85, 1
    %v188 = vpop.permute.xlu0 %187
    %189 = vrot.lane.b32.xlu0 %v86, 1
    %v190 = vpop.permute.xlu0 %189
    %191 = vrot.lane.b32.xlu0 %v87, 1
    %v192 = vpop.permute.xlu0 %191
    %v209 = vsub.f32 %v72, %v162
    %v210 = vsub.f32 %v73, %v164
    %v211 = vsub.f32 %v74, %v166
    %v212 = vsub.f32 %v75, %v168
    %v213 = vsub.f32 %v76, %v170
    %v214 = vsub.f32 %v77, %v172
    %v215 = vsub.f32 %v78, %v174
    %v216 = vsub.f32 %v79, %v176
    %v217 = vsub.f32 %v80, %v178
    %v218 = vsub.f32 %v81, %v180
    %v219 = vsub.f32 %v82, %v182
    %v220 = vsub.f32 %v83, %v184
    %v221 = vsub.f32 %v84, %v186
    %v222 = vsub.f32 %v85, %v188
    %v223 = vsub.f32 %v86, %v190
    %v224 = vsub.f32 %v87, %v192
    %v225 = vmul.f32 %v145, %v145
    %v226 = vmul.f32 %v146, %v146
    %v227 = vmul.f32 %v147, %v147
    %v228 = vmul.f32 %v148, %v148
    %v229 = vmul.f32 %v149, %v149
    %v230 = vmul.f32 %v150, %v150
    %v231 = vmul.f32 %v151, %v151
    %v232 = vmul.f32 %v152, %v152
    %v233 = vmul.f32 %v153, %v153
    %v234 = vmul.f32 %v154, %v154
    %v235 = vmul.f32 %v155, %v155
    %v236 = vmul.f32 %v156, %v156
    %v237 = vmul.f32 %v157, %v157
    %v238 = vmul.f32 %v158, %v158
    %v239 = vmul.f32 %v159, %v159
    %v240 = vmul.f32 %v160, %v160
    %v241 = vmul.f32 %v209, %v209
    %v242 = vmul.f32 %v210, %v210
    %v243 = vmul.f32 %v211, %v211
    %v244 = vmul.f32 %v212, %v212
    %v245 = vmul.f32 %v213, %v213
    %v246 = vmul.f32 %v214, %v214
    %v247 = vmul.f32 %v215, %v215
    %v248 = vmul.f32 %v216, %v216
    %v249 = vmul.f32 %v217, %v217
    %v250 = vmul.f32 %v218, %v218
    %v251 = vmul.f32 %v219, %v219
    %v252 = vmul.f32 %v220, %v220
    %v253 = vmul.f32 %v221, %v221
    %v254 = vmul.f32 %v222, %v222
    %v255 = vmul.f32 %v223, %v223
    %v256 = vmul.f32 %v224, %v224
    %v273 = vrot.slane %v241, 7
    %v274 = vrot.slane %v242, 7
    %v275 = vsel %vm104, %v273, %v274
    %v276 = vrot.slane %v243, 7
    %v277 = vrot.slane %v244, 7
    %v278 = vsel %vm104, %v276, %v277
    %v279 = vrot.slane %v245, 7
    %v280 = vrot.slane %v246, 7
    %v281 = vsel %vm104, %v279, %v280
    %v282 = vrot.slane %v247, 7
    %v283 = vrot.slane %v248, 7
    %v284 = vsel %vm104, %v282, %v283
    %v285 = vrot.slane %v249, 7
    %v286 = vrot.slane %v250, 7
    %v287 = vsel %vm104, %v285, %v286
    %v288 = vrot.slane %v251, 7
    %v289 = vrot.slane %v252, 7
    %v290 = vsel %vm104, %v288, %v289
    %v291 = vrot.slane %v253, 7
    %v292 = vrot.slane %v254, 7
    %v293 = vsel %vm104, %v291, %v292
    %v294 = vrot.slane %v255, 7
    %v295 = vrot.slane %v256, 7
    %v296 = vsel %vm104, %v294, %v295
    %297 = vrot.lane.b32.xlu0 %v273, 127
    %v298 = vpop.permute.xlu0 %297
    %299 = vrot.lane.b32.xlu0 %v275, 127
    %v300 = vpop.permute.xlu0 %299
    %301 = vrot.lane.b32.xlu0 %v276, 127
    %v302 = vpop.permute.xlu0 %301
    %303 = vrot.lane.b32.xlu0 %v278, 127
    %v304 = vpop.permute.xlu0 %303
    %305 = vrot.lane.b32.xlu0 %v279, 127
    %v306 = vpop.permute.xlu0 %305
    %307 = vrot.lane.b32.xlu0 %v281, 127
    %v308 = vpop.permute.xlu0 %307
    %309 = vrot.lane.b32.xlu0 %v282, 127
    %v310 = vpop.permute.xlu0 %309
    %311 = vrot.lane.b32.xlu0 %v284, 127
    %v312 = vpop.permute.xlu0 %311
    %313 = vrot.lane.b32.xlu0 %v285, 127
    %v314 = vpop.permute.xlu0 %313
    %315 = vrot.lane.b32.xlu0 %v287, 127
    %v316 = vpop.permute.xlu0 %315
    %317 = vrot.lane.b32.xlu0 %v288, 127
    %v318 = vpop.permute.xlu0 %317
    %319 = vrot.lane.b32.xlu0 %v290, 127
    %v320 = vpop.permute.xlu0 %319
    %321 = vrot.lane.b32.xlu0 %v291, 127
    %v322 = vpop.permute.xlu0 %321
    %323 = vrot.lane.b32.xlu0 %v293, 127
    %v324 = vpop.permute.xlu0 %323
    %325 = vrot.lane.b32.xlu0 %v294, 127
    %v326 = vpop.permute.xlu0 %325
    %327 = vrot.lane.b32.xlu0 %v296, 127
    %v328 = vpop.permute.xlu0 %327
    %v345 = vadd.f32 %v225, %v298
    %v346 = vadd.f32 %v226, %v300
    %v347 = vadd.f32 %v227, %v302
    %v348 = vadd.f32 %v228, %v304
    %v349 = vadd.f32 %v229, %v306
    %v350 = vadd.f32 %v230, %v308
    %v351 = vadd.f32 %v231, %v310
    %v352 = vadd.f32 %v232, %v312
    %v353 = vadd.f32 %v233, %v314
    %v354 = vadd.f32 %v234, %v316
    %v355 = vadd.f32 %v235, %v318
    %v356 = vadd.f32 %v236, %v320
    %v357 = vadd.f32 %v237, %v322
    %v358 = vadd.f32 %v238, %v324
    %v359 = vadd.f32 %v239, %v326
    %v360 = vadd.f32 %v240, %v328
    %vm361 = vcmask 121857
    %v362 = vsel %vm361, %v345, 0.0
    %v363 = vsel %vm361, %v347, 0.0
    %v364 = vadd.f32 %v362, %v363
    %v365 = vsel %vm361, %v349, 0.0
    %v366 = vadd.f32 %v364, %v365
    %v367 = vsel %vm361, %v351, 0.0
    %v368 = vadd.f32 %v366, %v367
    %v369 = vsel %vm361, %v353, 0.0
    %v370 = vadd.f32 %v368, %v369
    %v371 = vsel %vm361, %v355, 0.0
    %v372 = vadd.f32 %v370, %v371
    %v373 = vsel %vm361, %v357, 0.0
    %v374 = vadd.f32 %v372, %v373
    %v375 = vsel %vm361, %v359, 0.0
    %v376 = vadd.f32 %v374, %v375
    %vm377 = vcmask 121856
    %v378 = vsel %vm377, %v346, 0.0
    %v379 = vsel %vm377, %v348, 0.0
    %v380 = vadd.f32 %v378, %v379
    %v381 = vsel %vm377, %v350, 0.0
    %v382 = vadd.f32 %v380, %v381
    %v383 = vsel %vm377, %v352, 0.0
    %v384 = vadd.f32 %v382, %v383
    %v385 = vsel %vm377, %v354, 0.0
    %v386 = vadd.f32 %v384, %v385
    %v387 = vsel %vm377, %v356, 0.0
    %v388 = vadd.f32 %v386, %v387
    %v389 = vsel %vm377, %v358, 0.0
    %v390 = vadd.f32 %v388, %v389
    %v391 = vsel %vm377, %v360, 0.0
    %v392 = vadd.f32 %v390, %v391
    %vm395 = vcmask 1046528
    %v396 = vrot.slane %v376, 1
    %v397 = vrot.slane %v392, 1
    %v398 = vsel %vm395, %v396, %v397
    %v401 = vsel %vm377, %v398, 0.0
    %vm402 = vcmask 120832
    %v403 = vsel %vm402, %v397, 0.0
    %v404 = vadd.f32 %v401, %v403
    %405 = vadd.xlane.f32.xlu0 %v404
    %v406 = vpop.xlane.xlu0 %405
    %v407 = vrot.slane %v406, 4
    %v408 = vadd.f32 %v406, %v407
    %v409 = vrot.slane %v408, 2
    %v410 = vadd.f32 %v408, %v409
    %v411 = vrot.slane %v410, 1
    %v412 = vadd.f32 %v410, %v411
    %s413 = vtos %v412
    %v414 = vstv %s413
    %415 = vst [vmem:[#allocation7] sm:$0xff] %v414
    // Predicated region
    $region18: #{tpu_custom_call.1} parent=1 // pred_check
      _
    $region19: #{tpu_custom_call.1} parent=1 // pred_check_branch
      %417 = sbr.rel (0) target = $region21
    $region20: #{tpu_custom_call.1} parent=1 // pred_region
      %s419 = ssub.s32 128, 128
      %420 = vsyncadd [#allocation4], %s419
      %s422 = sshll.u32 [#allocation7], 4
      %s423 = int_to_ptr.vmem [resolvable:$true] %s422
      %425 = dma.vmem_to_hbm [thread:$0]  %s423, 128, %s2, [#allocation4]
    $region21: #{tpu_custom_call.1} parent=1 // pred_fallthru
      _
    // Predicated region
    $region22: #{tpu_custom_call.1} parent=1 // pred_check
      _
    $region23: #{tpu_custom_call.1} parent=1 // pred_check_branch
      %427 = sbr.rel (0) target = $region25
    $region24: #{tpu_custom_call.1} parent=1 // pred_region
      %428 = dma.done [#allocation4], 128
    $region25: #{tpu_custom_call.1} parent=1 // pred_fallthru
      _
    %429 = vsyncpa [#allocation3], 1
    %430 = vsyncpa [#allocation6], 1
    %431 = vsyncpa [#allocation4], 1

</llo_original>
